<compile_context>
chip_gen: v6e
topology: v6e:2x2x1
jax: 0.10.0
libtpu: 0.0.40
codegen_flags: <defaults>
</compile_context>

<pallas_src>
import functools

import jax
import jax.numpy as jnp
from jax.experimental import pallas as pl
from jax.experimental.pallas import tpu as pltpu


def _supports_bf16_compute():
    """bf16 VPU/EUP exists on v6e (Trillium) and v7x; not on v5e and older."""
    try:
        kind = jax.devices()[0].device_kind.lower()
    except Exception:
        return False
    return any(tag in kind for tag in ("v6", "v7", "7x", "trillium"))


def _sigmoid(x):
    # Single-transcendental sigmoid: sigmoid(x) = 0.5 * tanh(0.5 * x) + 0.5.
    half = jnp.asarray(0.5, x.dtype)
    return half * jnp.tanh(half * x) + half


def _dcsnn_kernel(num_hidden, in_dim, part_in_dim, out_reduce, compute_dtype,
                  x_ref, z_ref, w1x_ref, w1z_ref, b1_ref, *rest):
    """Whole MLP forward for one batch tile, batch-on-lanes layout.

    x_ref  : (in_dim, tile_b)        x^T tile (f32)
    z_ref  : (part_in_dim, tile_b)   z^T tile (f32)
    w1x_ref: (h0, in_dim)            ln_in weight, x part (f32)
    w1z_ref: (h0, part_in_dim)       fused ln_in-z @ ln_embed weight (f32)
    b1_ref : (h0, 1)
    rest   = (Wh_0, bh_0, ..., Wh_{n-1}, bh_{n-1}, Wout_k, bout, out_ref)
      Wh_i  (h_{i+1}, h_i)  in compute_dtype,  bh_i (h_{i+1}, 1) f32
      Wout_k: (h_last, 1) f32 if out_reduce else (out_dim, h_last) compute_dtype
      bout  : (out_dim, 1) f32,  out_ref (out_dim, tile_b)
    """
    hidden_refs = rest[:2 * num_hidden]
    wout_ref, bout_ref, out_ref = rest[2 * num_hidden:]

    x = x_ref[...]                         # (in_dim, tile_b)
    z = z_ref[...]                         # (part_in_dim, tile_b)
    w1x = w1x_ref[...]                     # (h0, in_dim)
    w1z = w1z_ref[...]                     # (h0, part_in_dim)

    # First layer on the VPU: K = in_dim + part_in_dim (<= 4) outer-product FMAs.
    acc = w1x[:, 0:1] * x[0:1, :]
    for k in range(1, in_dim):
        acc = acc + w1x[:, k:k + 1] * x[k:k + 1, :]
    for k in range(part_in_dim):
        acc = acc + w1z[:, k:k + 1] * z[k:k + 1, :]
    h = _sigmoid((acc + b1_ref[...]).astype(compute_dtype))

    # Hidden layers (static unroll). MXU: M = h_{i+1}, K = h_i, N = tile_b.
    for i in range(num_hidden):
        w = hidden_refs[2 * i][...]        # (h_{i+1}, h_i), compute_dtype
        b = hidden_refs[2 * i + 1][...]    # (h_{i+1}, 1), f32
        pre = jnp.dot(w, h, preferred_element_type=jnp.float32) + b
        h = _sigmoid(pre.astype(compute_dtype))

    if out_reduce:
        # out_dim == 1: VPU broadcast multiply + XLU sublane reduction; avoids an
        # M=1 MXU push/pop latency tail.
        wcol = wout_ref[...]                                  # (h_last, 1) f32
        hf = h.astype(jnp.float32)
        out = jnp.sum(wcol * hf, axis=0, keepdims=True) + bout_ref[...]
    else:
        out = jnp.dot(wout_ref[...], h.astype(wout_ref.dtype),
                      preferred_element_type=jnp.float32) + bout_ref[...]
    out_ref[...] = out.astype(out_ref.dtype)


def prepare_params(params, *, use_bf16=None):
    """One-time parameter prep (hoisted off the forward path).

    params are in PyTorch layout:
      we    : (part_out_dim, part_in_dim)       ln_embed.weight
      w_in  : (h0, in_dim + part_out_dim)       ln_in.weight
      b_in  : (h0,)                             ln_in.bias
      hidden: list of (W (h_{i+1}, h_i), b (h_{i+1},))
      wout  : (out_dim, h_last), b_out : (out_dim,)
    """
    if use_bf16 is None:
        use_bf16 = _supports_bf16_compute()
    cdt = jnp.bfloat16 if use_bf16 else jnp.float32

    we, w_in, b_in = params["we"], params["w_in"], params["b_in"]
    hidden, wout, b_out = params["hidden"], params["wout"], params["b_out"]

    part_out_dim = we.shape[0]
    in_dim = w_in.shape[1] - part_out_dim
    h0 = w_in.shape[0]
    out_dim = wout.shape[0]

    # Exact algebraic fusion of ln_embed into ln_in (z part).
    w1x = w_in[:, :in_dim].astype(jnp.float32)                 # (h0, in_dim)
    w1z = (w_in[:, in_dim:] @ we).astype(jnp.float32)          # (h0, part_in_dim)

    hidden_flat = [(w.astype(cdt), b.reshape(-1, 1).astype(jnp.float32))
                   for (w, b) in hidden]

    out_reduce = (out_dim == 1)
    wout_k = wout.T.astype(jnp.float32) if out_reduce else wout.astype(cdt)

    prepared = dict(
        w1x=w1x, w1z=w1z,
        b1=b_in.reshape(h0, 1).astype(jnp.float32),
        hidden=hidden_flat,
        wout=wout_k,
        bout=b_out.reshape(out_dim, 1).astype(jnp.float32),
    )
    return prepared, dict(use_bf16=use_bf16, out_reduce=out_reduce)


def _pick_tile_b(padded_b):
    """Largest multiple-of-128 tile <= 512 that divides the padded batch,
    preferring >= 2 grid steps (v7x has 2 TensorCores) when batch >= 256."""
    if padded_b <= 128:
        return padded_b
    cands = [t for t in range(128, min(512, padded_b) + 1, 128)
             if padded_b % t == 0]
    if not cands:
        return padded_b
    if padded_b >= 256:
        two_step = [t for t in cands if padded_b // t >= 2]
        if two_step:
            cands = two_step
    return max(cands)


@functools.partial(jax.jit, static_argnames=("tile_b",))
def dcsnn_forward(x, z, prepared, *, tile_b=None):
    """Jitted Pallas-call wrapper. x: (B, in_dim), z: (B, part_in_dim), both f32."""
    B, in_dim = x.shape
    _, part_in_dim = z.shape
    num_hidden = len(prepared["hidden"])
    out_dim = prepared["bout"].shape[0]
    out_reduce = (out_dim == 1)

    compute_dtype = jnp.float32
    if num_hidden:
        compute_dtype = prepared["hidden"][0][0].dtype
    elif not out_reduce:
        compute_dtype = prepared["wout"].dtype

    # Pad batch to a multiple of 128 so every DMA / store is lane-dense & unmasked.
    padded_b = ((B + 127) // 128) * 128
    if tile_b is None:
        tile_b = _pick_tile_b(padded_b)
    assert padded_b % tile_b == 0 and (tile_b % 128 == 0 or tile_b == padded_b), (
        "batch tile must divide the padded batch and be a multiple of 128")

    # Batch-on-lanes layout; no concatenated intermediate (x^T, z^T passed separately).
    x_t = x.T
    z_t = z.T
    if padded_b != B:
        pad = padded_b - B
        x_t = jnp.pad(x_t, ((0, 0), (0, pad)))
        z_t = jnp.pad(z_t, ((0, 0), (0, pad)))

    flat_params = [prepared["w1x"], prepared["w1z"], prepared["b1"]]
    for (w, b) in prepared["hidden"]:
        flat_params += [w, b]
    flat_params += [prepared["wout"], prepared["bout"]]

    def batch_spec(feat):
        return pl.BlockSpec((feat, tile_b), lambda i: (0, i))

    def full_spec(p):
        return pl.BlockSpec(p.shape, lambda i: (0, 0))

    in_specs = ([batch_spec(in_dim), batch_spec(part_in_dim)]
                + [full_spec(p) for p in flat_params])

    kernel = functools.partial(_dcsnn_kernel, num_hidden, in_dim,
                               part_in_dim, out_reduce, compute_dtype)

    out_t = pl.pallas_call(
        kernel,
        out_shape=jax.ShapeDtypeStruct((out_dim, padded_b), x.dtype),
        grid_spec=pltpu.PrefetchScalarGridSpec(
            num_scalar_prefetch=0,
            grid=(padded_b // tile_b,),
            in_specs=in_specs,
            out_specs=batch_spec(out_dim),
        ),
        compiler_params=pltpu.CompilerParams(
            dimension_semantics=("parallel",)),
    )(x_t, z_t, *flat_params)

    return out_t[:, :B].T                                    # (B, out_dim)


def make_params(key, in_dim, hidden_dim, out_dim, part_in_dim, part_out_dim):
    """Deterministic synthetic parameters (PyTorch-style uniform init, PyTorch layout)."""
    def linear(key, fan_in, fan_out, bias=True):
        kw, kb = jax.random.split(key)
        bound = 1.0 / (fan_in ** 0.5)
        w = jax.random.uniform(kw, (fan_out, fan_in), jnp.float32, -bound, bound)
        if bias:
            b = jax.random.uniform(kb, (fan_out,), jnp.float32, -bound, bound)
            return w, b
        return w, None

    keys = jax.random.split(key, 3 + len(hidden_dim))
    we, _ = linear(keys[0], part_in_dim, part_out_dim, bias=False)
    w_in, b_in = linear(keys[1], in_dim + part_out_dim, hidden_dim[0])
    hidden = []
    for i in range(len(hidden_dim) - 1):
        w, b = linear(keys[2 + i], hidden_dim[i], hidden_dim[i + 1])
        hidden.append((w, b))
    wout, b_out = linear(keys[-1], hidden_dim[-1], out_dim)
    return dict(we=we, w_in=w_in, b_in=b_in, hidden=hidden,
                wout=wout, b_out=b_out)


def reference_forward(x, z, params):
    """Pure-JAX reference matching the PyTorch module exactly."""
    z_emb = z @ params["we"].T
    h = jnp.concatenate([x, z_emb], axis=1)
    h = jax.nn.sigmoid(h @ params["w_in"].T + params["b_in"])
    for (w, b) in params["hidden"]:
        h = jax.nn.sigmoid(h @ w.T + b)
    return h @ params["wout"].T + params["b_out"]


if __name__ == "__main__":
    # Model hyperparameters consistent with the DCSNN forward:
    in_dim, part_in_dim, part_out_dim = 2, 2, 1
    hidden_dim = [32, 32]
    out_dim = 1
    batch = 256  # -> padded_b = 256, tile_b = 128, grid = 2 "parallel" steps

    key = jax.random.PRNGKey(0)
    kp, kx, kz = jax.random.split(key, 3)
    params = make_params(kp, in_dim, hidden_dim, out_dim, part_in_dim, part_out_dim)
    x = jax.random.normal(kx, (batch, in_dim), jnp.float32)
    z = jax.random.normal(kz, (batch, part_in_dim), jnp.float32)

    ref = reference_forward(x, z, params)

    # f32 path: must match the PyTorch-equivalent reference tightly.
    prep_f32, _ = prepare_params(params, use_bf16=False)
    out_f32 = jax.block_until_ready(dcsnn_forward(x, z, prep_f32))
    assert out_f32.shape == (batch, out_dim)
    assert jnp.allclose(out_f32, ref, atol=1e-5, rtol=1e-5), "f32 mismatch vs. JAX reference"

    # Auto path: bf16 32x32 matmuls / sigmoid on v6e/v7x, f32 on v5e and older.
    prep_auto, info = prepare_params(params)
    out_auto = jax.block_until_ready(dcsnn_forward(x, z, prep_auto))
    tol = 5e-2 if info["use_bf16"] else 1e-5
    assert jnp.allclose(out_auto, ref, atol=tol, rtol=tol), "auto-dtype mismatch vs. JAX reference"

    print("KERNEL_OK")
</pallas_src>

<mosaic_0001>
module attributes {stable_mosaic.version = 11 : i64} {
  func.func @_dcsnn_kernel(%arg0: i32, %arg1: memref<2x128xf32, #tpu.memory_space<vmem>>, %arg2: memref<2x128xf32, #tpu.memory_space<vmem>>, %arg3: memref<32x2xf32, #tpu.memory_space<vmem>>, %arg4: memref<32x2xf32, #tpu.memory_space<vmem>>, %arg5: memref<32x1xf32, #tpu.memory_space<vmem>>, %arg6: memref<32x32xf32, #tpu.memory_space<vmem>>, %arg7: memref<32x1xf32, #tpu.memory_space<vmem>>, %arg8: memref<32x1xf32, #tpu.memory_space<vmem>>, %arg9: memref<1x1xf32, #tpu.memory_space<vmem>>, %arg10: memref<1x128xf32, #tpu.memory_space<vmem>>) attributes {dimension_semantics = [#tpu.dimension_semantics<parallel>], iteration_bounds = array<i64: 2>, scalar_prefetch = 0 : i64, scratch_operands = 0 : i64, tpu.core_type = #tpu.core_type<tc>, window_params = [{transform_indices = @transform_0, window_bounds = array<i64: 2, 128>}, {transform_indices = @transform_1, window_bounds = array<i64: 2, 128>}, {pipeline_mode = #tpu.pipeline_mode<synchronous>, transform_indices = @transform_2, window_bounds = array<i64: 32, 2>}, {pipeline_mode = #tpu.pipeline_mode<synchronous>, transform_indices = @transform_3, window_bounds = array<i64: 32, 2>}, {pipeline_mode = #tpu.pipeline_mode<synchronous>, transform_indices = @transform_4, window_bounds = array<i64: 32, 1>}, {pipeline_mode = #tpu.pipeline_mode<synchronous>, transform_indices = @transform_5, window_bounds = array<i64: 32, 32>}, {pipeline_mode = #tpu.pipeline_mode<synchronous>, transform_indices = @transform_6, window_bounds = array<i64: 32, 1>}, {pipeline_mode = #tpu.pipeline_mode<synchronous>, transform_indices = @transform_7, window_bounds = array<i64: 32, 1>}, {pipeline_mode = #tpu.pipeline_mode<synchronous>, transform_indices = @transform_8, window_bounds = array<i64: 1, 1>}, {transform_indices = @transform_9, window_bounds = array<i64: 1, 128>}]} {
    %c0 = arith.constant 0 : index
    %c0_0 = arith.constant 0 : index
    %0 = vector.load %arg1[%c0, %c0_0] : memref<2x128xf32, #tpu.memory_space<vmem>>, vector<2x128xf32>
    %c0_1 = arith.constant 0 : index
    %c0_2 = arith.constant 0 : index
    %1 = vector.load %arg2[%c0_1, %c0_2] : memref<2x128xf32, #tpu.memory_space<vmem>>, vector<2x128xf32>
    %c0_3 = arith.constant 0 : index
    %c0_4 = arith.constant 0 : index
    %2 = vector.load %arg3[%c0_3, %c0_4] : memref<32x2xf32, #tpu.memory_space<vmem>>, vector<32x2xf32>
    %c0_5 = arith.constant 0 : index
    %c0_6 = arith.constant 0 : index
    %3 = vector.load %arg4[%c0_5, %c0_6] : memref<32x2xf32, #tpu.memory_space<vmem>>, vector<32x2xf32>
    %4 = vector.extract_strided_slice %2 {offsets = [0, 0], sizes = [32, 1], strides = [1, 1]} : vector<32x2xf32> to vector<32x1xf32>
    %5 = vector.extract_strided_slice %0 {offsets = [0, 0], sizes = [1, 128], strides = [1, 1]} : vector<2x128xf32> to vector<1x128xf32>
    %6 = vector.broadcast %4 : vector<32x1xf32> to vector<32x128xf32>
    %7 = vector.broadcast %5 : vector<1x128xf32> to vector<32x128xf32>
    %8 = arith.mulf %6, %7 : vector<32x128xf32>
    %9 = vector.extract_strided_slice %2 {offsets = [0, 1], sizes = [32, 1], strides = [1, 1]} : vector<32x2xf32> to vector<32x1xf32>
    %10 = vector.extract_strided_slice %0 {offsets = [1, 0], sizes = [1, 128], strides = [1, 1]} : vector<2x128xf32> to vector<1x128xf32>
    %11 = vector.broadcast %9 : vector<32x1xf32> to vector<32x128xf32>
    %12 = vector.broadcast %10 : vector<1x128xf32> to vector<32x128xf32>
    %13 = arith.mulf %11, %12 : vector<32x128xf32>
    %14 = arith.addf %8, %13 : vector<32x128xf32>
    %15 = vector.extract_strided_slice %3 {offsets = [0, 0], sizes = [32, 1], strides = [1, 1]} : vector<32x2xf32> to vector<32x1xf32>
    %16 = vector.extract_strided_slice %1 {offsets = [0, 0], sizes = [1, 128], strides = [1, 1]} : vector<2x128xf32> to vector<1x128xf32>
    %17 = vector.broadcast %15 : vector<32x1xf32> to vector<32x128xf32>
    %18 = vector.broadcast %16 : vector<1x128xf32> to vector<32x128xf32>
    %19 = arith.mulf %17, %18 : vector<32x128xf32>
    %20 = arith.addf %14, %19 : vector<32x128xf32>
    %21 = vector.extract_strided_slice %3 {offsets = [0, 1], sizes = [32, 1], strides = [1, 1]} : vector<32x2xf32> to vector<32x1xf32>
    %22 = vector.extract_strided_slice %1 {offsets = [1, 0], sizes = [1, 128], strides = [1, 1]} : vector<2x128xf32> to vector<1x128xf32>
    %23 = vector.broadcast %21 : vector<32x1xf32> to vector<32x128xf32>
    %24 = vector.broadcast %22 : vector<1x128xf32> to vector<32x128xf32>
    %25 = arith.mulf %23, %24 : vector<32x128xf32>
    %26 = arith.addf %20, %25 : vector<32x128xf32>
    %c0_7 = arith.constant 0 : index
    %c0_8 = arith.constant 0 : index
    %27 = vector.load %arg5[%c0_7, %c0_8] : memref<32x1xf32, #tpu.memory_space<vmem>>, vector<32x1xf32>
    %28 = vector.broadcast %27 : vector<32x1xf32> to vector<32x128xf32>
    %29 = arith.addf %26, %28 : vector<32x128xf32>
    %cst = arith.constant 5.000000e-01 : f32
    %30 = vector.broadcast %cst : f32 to vector<32x128xf32>
    %31 = arith.mulf %30, %29 : vector<32x128xf32>
    %32 = math.tanh %31 : vector<32x128xf32>
    %cst_9 = arith.constant 5.000000e-01 : f32
    %33 = vector.broadcast %cst_9 : f32 to vector<32x128xf32>
    %34 = arith.mulf %33, %32 : vector<32x128xf32>
    %cst_10 = arith.constant 5.000000e-01 : f32
    %35 = vector.broadcast %cst_10 : f32 to vector<32x128xf32>
    %36 = arith.addf %34, %35 : vector<32x128xf32>
    %c0_11 = arith.constant 0 : index
    %c0_12 = arith.constant 0 : index
    %37 = vector.load %arg6[%c0_11, %c0_12] : memref<32x32xf32, #tpu.memory_space<vmem>>, vector<32x32xf32>
    %c0_13 = arith.constant 0 : index
    %c0_14 = arith.constant 0 : index
    %38 = vector.load %arg7[%c0_13, %c0_14] : memref<32x1xf32, #tpu.memory_space<vmem>>, vector<32x1xf32>
    %cst_15 = arith.constant dense<0.000000e+00> : vector<32x128xf32>
    %39 = tpu.matmul %37, %36, %cst_15 {dimension_numbers = #tpu.dot_dimension_numbers<[1], [0], [0], [1], [0, 0, 1, 1], [], []>} : vector<32x32xf32>, vector<32x128xf32>, vector<32x128xf32> -> vector<32x128xf32>
    %40 = vector.broadcast %38 : vector<32x1xf32> to vector<32x128xf32>
    %41 = arith.addf %39, %40 : vector<32x128xf32>
    %cst_16 = arith.constant 5.000000e-01 : f32
    %42 = vector.broadcast %cst_16 : f32 to vector<32x128xf32>
    %43 = arith.mulf %42, %41 : vector<32x128xf32>
    %44 = math.tanh %43 : vector<32x128xf32>
    %cst_17 = arith.constant 5.000000e-01 : f32
    %45 = vector.broadcast %cst_17 : f32 to vector<32x128xf32>
    %46 = arith.mulf %45, %44 : vector<32x128xf32>
    %cst_18 = arith.constant 5.000000e-01 : f32
    %47 = vector.broadcast %cst_18 : f32 to vector<32x128xf32>
    %48 = arith.addf %46, %47 : vector<32x128xf32>
    %c0_19 = arith.constant 0 : index
    %c0_20 = arith.constant 0 : index
    %49 = vector.load %arg8[%c0_19, %c0_20] : memref<32x1xf32, #tpu.memory_space<vmem>>, vector<32x1xf32>
    %50 = vector.broadcast %49 : vector<32x1xf32> to vector<32x128xf32>
    %51 = arith.mulf %50, %48 : vector<32x128xf32>
    %cst_21 = arith.constant dense<0.000000e+00> : vector<128xf32>
    %52 = vector.multi_reduction <add>, %51, %cst_21 [0] : vector<32x128xf32> to vector<128xf32>
    %53 = vector.shape_cast %52 : vector<128xf32> to vector<1x128xf32>
    %c0_22 = arith.constant 0 : index
    %c0_23 = arith.constant 0 : index
    %54 = vector.load %arg9[%c0_22, %c0_23] : memref<1x1xf32, #tpu.memory_space<vmem>>, vector<1x1xf32>
    %55 = vector.broadcast %54 : vector<1x1xf32> to vector<1x128xf32>
    %56 = arith.addf %53, %55 : vector<1x128xf32>
    %c0_24 = arith.constant 0 : index
    %c0_25 = arith.constant 0 : index
    %57 = vector.load %arg10[%c0_24, %c0_25] : memref<1x128xf32, #tpu.memory_space<vmem>>, vector<1x128xf32>
    tpu.vector_store %arg10[%c0_24, %c0_25], %56 {strides = array<i32>} : memref<1x128xf32, #tpu.memory_space<vmem>>, vector<1x128xf32>,
    return
  }
  func.func @transform_0(%arg0: i32) -> (i32, i32) {
    %c0_i32 = arith.constant 0 : i32
    %c0_i32_0 = arith.constant 0 : i32
    return %c0_i32, %arg0 : i32, i32
  }
  func.func @transform_1(%arg0: i32) -> (i32, i32) {
    %c0_i32 = arith.constant 0 : i32
    %c0_i32_0 = arith.constant 0 : i32
    return %c0_i32, %arg0 : i32, i32
  }
  func.func @transform_2(%arg0: i32) -> (i32, i32) {
    %c0_i32 = arith.constant 0 : i32
    %c0_i32_0 = arith.constant 0 : i32
    %c0_i32_1 = arith.constant 0 : i32
    return %c0_i32, %c0_i32_0 : i32, i32
  }
  func.func @transform_3(%arg0: i32) -> (i32, i32) {
    %c0_i32 = arith.constant 0 : i32
    %c0_i32_0 = arith.constant 0 : i32
    %c0_i32_1 = arith.constant 0 : i32
    return %c0_i32, %c0_i32_0 : i32, i32
  }
  func.func @transform_4(%arg0: i32) -> (i32, i32) {
    %c0_i32 = arith.constant 0 : i32
    %c0_i32_0 = arith.constant 0 : i32
    %c0_i32_1 = arith.constant 0 : i32
    return %c0_i32, %c0_i32_0 : i32, i32
  }
  func.func @transform_5(%arg0: i32) -> (i32, i32) {
    %c0_i32 = arith.constant 0 : i32
    %c0_i32_0 = arith.constant 0 : i32
    %c0_i32_1 = arith.constant 0 : i32
    return %c0_i32, %c0_i32_0 : i32, i32
  }
  func.func @transform_6(%arg0: i32) -> (i32, i32) {
    %c0_i32 = arith.constant 0 : i32
    %c0_i32_0 = arith.constant 0 : i32
    %c0_i32_1 = arith.constant 0 : i32
    return %c0_i32, %c0_i32_0 : i32, i32
  }
  func.func @transform_7(%arg0: i32) -> (i32, i32) {
    %c0_i32 = arith.constant 0 : i32
    %c0_i32_0 = arith.constant 0 : i32
    %c0_i32_1 = arith.constant 0 : i32
    return %c0_i32, %c0_i32_0 : i32, i32
  }
  func.func @transform_8(%arg0: i32) -> (i32, i32) {
    %c0_i32 = arith.constant 0 : i32
    %c0_i32_0 = arith.constant 0 : i32
    %c0_i32_1 = arith.constant 0 : i32
    return %c0_i32, %c0_i32_0 : i32, i32
  }
  func.func @transform_9(%arg0: i32) -> (i32, i32) {
    %c0_i32 = arith.constant 0 : i32
    %c0_i32_0 = arith.constant 0 : i32
    return %c0_i32, %arg0 : i32, i32
  }
}

</mosaic_0001>

<llo_original>
// kernel: dcsnn_forward.1
$region0: #{dcsnn_forward.1}
  #allocation0 [shape = 'u32[]', space=smem, size = 0x4, offset = 0x4, fixed_abs, tag = 'smem constant byte address 0x4 - core index']
  #allocation1 [shape = 'u32[144,128]{1,0:T(1,128)}', space=vmem, size = 0x12000, scoped, tag = 'internal scratch']
  #allocation2 [shape = 'f32[1,1]{1,0:T(1,128)S(1)}', space=vmem, size = 0x200, scoped, tag = 'scoped memory for dcsnn_forward.1']
  %s0 = inlined_call_operand.vmem [shape: f32[2,256], index: 0, kind: input, shape index: {}]
  %s1 = inlined_call_operand.vmem [shape: f32[2,256], index: 1, kind: input, shape index: {}]
  %s2 = inlined_call_operand.vmem [shape: f32[32,2], index: 2, kind: input, shape index: {}]
  %s3 = inlined_call_operand.vmem [shape: f32[32,2], index: 3, kind: input, shape index: {}]
  %s4 = inlined_call_operand.vmem [shape: f32[32,1], index: 4, kind: input, shape index: {}]
  %s5 = inlined_call_operand.vmem [shape: f32[32,32], index: 5, kind: input, shape index: {}]
  %s6 = inlined_call_operand.vmem [shape: f32[32,1], index: 6, kind: input, shape index: {}]
  %s7 = inlined_call_operand.vmem [shape: f32[32,1], index: 7, kind: input, shape index: {}]
  %s8 = inlined_call_operand.<no memory space> [shape: f32[1,1], index: 8, kind: input, shape index: {}]
  %s9 = inlined_call_operand.hbm [shape: f32[1,256], index: 9, kind: output, shape index: {}]
  %s10 = sld [smem:[#allocation0]]
  $region69: #{dcsnn_forward.1} parent=0
    _
  %s12 = ssub.s32 1, %s10
  %s13 = scalar_select 0, %s12, %s10
  %v14 = vstv %s8
  %15 = vst [vmem:[#allocation2] sm:$0x1] %v14
  $region1: #{dcsnn_forward.1} parent=0
    #allocation3 [shape = 'u8[1024]{0}', space=vmem, size = 0x400, scoped, tag = 'output window, operand 0']
    #allocation4 [shape = 's32[2]{0}', space=sflag, size = 0x8, scoped, tag = 'scoped memory for dcsnn_forward.1']
    %16 = vsyncpa [#allocation4], 0
    %s17 = scalar_lea.sflag [#allocation4], 1
    %18 = vsyncpa %s17, 0
    loop: start=0, step=1, limit=4
    $region2: #{dcsnn_forward.1} parent=1 // loop_pre_header
      _
    $region3: #{dcsnn_forward.1} parent=1 // loop_header
      %s20 = sphi 0, %s24
      %p21 = scmp.ge.s32.totalorder %s20, 4
      %s30 = sphi 0, %s32
      %s33 = sphi 0, %s30
      %s34 = sphi 0, %s33
      %s50 = sphi 0, %s34
      %s56 = sphi 0, %s58
      %s59 = sphi 0, %s56
      %s60 = sphi 0, %s59
      %s76 = sphi 0, %s60
      %s80 = sphi 0, %s80
      %s82 = sphi 0, %s80
      %s83 = sphi 0, %s82
      %s97 = sphi 0, %s83
      %s101 = sphi 0, %s101
      %s103 = sphi 0, %s101
      %s104 = sphi 0, %s103
      %s118 = sphi 0, %s104
      %s122 = sphi 0, %s122
      %s124 = sphi 0, %s122
      %s125 = sphi 0, %s124
      %s139 = sphi 0, %s125
      %s143 = sphi 0, %s143
      %s145 = sphi 0, %s143
      %s146 = sphi 0, %s145
      %s160 = sphi 0, %s146
      %s164 = sphi 0, %s164
      %s166 = sphi 0, %s164
      %s167 = sphi 0, %s166
      %s181 = sphi 0, %s167
      %s185 = sphi 0, %s185
      %s187 = sphi 0, %s185
      %s188 = sphi 0, %s187
      %s202 = sphi 0, %s188
      %s206 = sphi 0, %s206
      %s208 = sphi 0, %s206
      %s209 = sphi 0, %s208
      %s223 = sphi 0, %s209
      %s229 = sphi 0, %s231
      %s232 = sphi 0, %s229
      %s233 = sphi 0, %s232
      %s249 = sphi 0, %s233
    $region4: #{dcsnn_forward.1} parent=1 // loop_header_branch
      %23 = sbr.rel (%p21) target = $region8
    $region5: #{dcsnn_forward.1} parent=1 // loop_body
      %s25 = ssub.s32 %s20, 1
      %s26 = ssub.s32 %s20, 2
      %s27 = sadd.s32 %s20, 1
      %s28 = ssub.s32 %s20, %s27
      %p29 = scmp.eq.s32.totalorder %s28, 0
      %s31 = sadd.s32 %s30, 1
      %s32 = scalar_select %p29, %s30, %s31
      %p35 = pneg %p29
      %p36 = scmp.eq.s32.totalorder %s20, 1
      %p37 = por %p35, %p36
      %p38 = scmp.ne.s32.totalorder %s30, %s33
      %p39 = scmp.eq.s32.totalorder %s20, 0
      %p40 = por %p38, %p39
      %p41 = scmp.ne.s32.totalorder %s30, %s33
      %p42 = scmp.eq.s32.totalorder %s25, 1
      %p43 = por %p41, %p42
      %p44 = scmp.ne.s32.totalorder %s33, %s34
      %p45 = scmp.eq.s32.totalorder %s25, 0
      %p46 = por %p44, %p45
      %p47 = scmp.ne.s32.totalorder %s33, %s34
      %p48 = scmp.eq.s32.totalorder %s26, 1
      %p49 = por %p47, %p48
      %p51 = scmp.ne.s32.totalorder %s34, %s50
      %p52 = scmp.eq.s32.totalorder %s26, 0
      %p53 = por %p51, %p52
      %s54 = ssub.s32 %s20, %s27
      %p55 = scmp.eq.s32.totalorder %s54, 0
      %s57 = sadd.s32 %s56, 1
      %s58 = scalar_select %p55, %s56, %s57
      %p61 = pneg %p55
      %p62 = scmp.eq.s32.totalorder %s20, 1
      %p63 = por %p61, %p62
      %p64 = scmp.ne.s32.totalorder %s56, %s59
      %p65 = scmp.eq.s32.totalorder %s20, 0
      %p66 = por %p64, %p65
      %p67 = scmp.ne.s32.totalorder %s56, %s59
      %p68 = scmp.eq.s32.totalorder %s25, 1
      %p69 = por %p67, %p68
      %p70 = scmp.ne.s32.totalorder %s59, %s60
      %p71 = scmp.eq.s32.totalorder %s25, 0
      %p72 = por %p70, %p71
      %p73 = scmp.ne.s32.totalorder %s59, %s60
      %p74 = scmp.eq.s32.totalorder %s26, 1
      %p75 = por %p73, %p74
      %p77 = scmp.ne.s32.totalorder %s60, %s76
      %p78 = scmp.eq.s32.totalorder %s26, 0
      %p79 = por %p77, %p78
      %s81 = sadd.s32 %s80, 1
      %p84 = scmp.eq.s32.totalorder %s20, 1
      %p85 = scmp.ne.s32.totalorder %s80, %s82
      %p86 = scmp.eq.s32.totalorder %s20, 0
      %p87 = por %p85, %p86
      %p88 = scmp.ne.s32.totalorder %s80, %s82
      %p89 = scmp.eq.s32.totalorder %s25, 1
      %p90 = por %p88, %p89
      %p91 = scmp.ne.s32.totalorder %s82, %s83
      %p92 = scmp.eq.s32.totalorder %s25, 0
      %p93 = por %p91, %p92
      %p94 = scmp.ne.s32.totalorder %s82, %s83
      %p95 = scmp.eq.s32.totalorder %s26, 1
      %p96 = por %p94, %p95
      %p98 = scmp.ne.s32.totalorder %s83, %s97
      %p99 = scmp.eq.s32.totalorder %s26, 0
      %p100 = por %p98, %p99
      %s102 = sadd.s32 %s101, 1
      %p105 = scmp.eq.s32.totalorder %s20, 1
      %p106 = scmp.ne.s32.totalorder %s101, %s103
      %p107 = scmp.eq.s32.totalorder %s20, 0
      %p108 = por %p106, %p107
      %p109 = scmp.ne.s32.totalorder %s101, %s103
      %p110 = scmp.eq.s32.totalorder %s25, 1
      %p111 = por %p109, %p110
      %p112 = scmp.ne.s32.totalorder %s103, %s104
      %p113 = scmp.eq.s32.totalorder %s25, 0
      %p114 = por %p112, %p113
      %p115 = scmp.ne.s32.totalorder %s103, %s104
      %p116 = scmp.eq.s32.totalorder %s26, 1
      %p117 = por %p115, %p116
      %p119 = scmp.ne.s32.totalorder %s104, %s118
      %p120 = scmp.eq.s32.totalorder %s26, 0
      %p121 = por %p119, %p120
      %s123 = sadd.s32 %s122, 1
      %p126 = scmp.eq.s32.totalorder %s20, 1
      %p127 = scmp.ne.s32.totalorder %s122, %s124
      %p128 = scmp.eq.s32.totalorder %s20, 0
      %p129 = por %p127, %p128
      %p130 = scmp.ne.s32.totalorder %s122, %s124
      %p131 = scmp.eq.s32.totalorder %s25, 1
      %p132 = por %p130, %p131
      %p133 = scmp.ne.s32.totalorder %s124, %s125
      %p134 = scmp.eq.s32.totalorder %s25, 0
      %p135 = por %p133, %p134
      %p136 = scmp.ne.s32.totalorder %s124, %s125
      %p137 = scmp.eq.s32.totalorder %s26, 1
      %p138 = por %p136, %p137
      %p140 = scmp.ne.s32.totalorder %s125, %s139
      %p141 = scmp.eq.s32.totalorder %s26, 0
      %p142 = por %p140, %p141
      %s144 = sadd.s32 %s143, 1
      %p147 = scmp.eq.s32.totalorder %s20, 1
      %p148 = scmp.ne.s32.totalorder %s143, %s145
      %p149 = scmp.eq.s32.totalorder %s20, 0
      %p150 = por %p148, %p149
      %p151 = scmp.ne.s32.totalorder %s143, %s145
      %p152 = scmp.eq.s32.totalorder %s25, 1
      %p153 = por %p151, %p152
      %p154 = scmp.ne.s32.totalorder %s145, %s146
      %p155 = scmp.eq.s32.totalorder %s25, 0
      %p156 = por %p154, %p155
      %p157 = scmp.ne.s32.totalorder %s145, %s146
      %p158 = scmp.eq.s32.totalorder %s26, 1
      %p159 = por %p157, %p158
      %p161 = scmp.ne.s32.totalorder %s146, %s160
      %p162 = scmp.eq.s32.totalorder %s26, 0
      %p163 = por %p161, %p162
      %s165 = sadd.s32 %s164, 1
      %p168 = scmp.eq.s32.totalorder %s20, 1
      %p169 = scmp.ne.s32.totalorder %s164, %s166
      %p170 = scmp.eq.s32.totalorder %s20, 0
      %p171 = por %p169, %p170
      %p172 = scmp.ne.s32.totalorder %s164, %s166
      %p173 = scmp.eq.s32.totalorder %s25, 1
      %p174 = por %p172, %p173
      %p175 = scmp.ne.s32.totalorder %s166, %s167
      %p176 = scmp.eq.s32.totalorder %s25, 0
      %p177 = por %p175, %p176
      %p178 = scmp.ne.s32.totalorder %s166, %s167
      %p179 = scmp.eq.s32.totalorder %s26, 1
      %p180 = por %p178, %p179
      %p182 = scmp.ne.s32.totalorder %s167, %s181
      %p183 = scmp.eq.s32.totalorder %s26, 0
      %p184 = por %p182, %p183
      %s186 = sadd.s32 %s185, 1
      %p189 = scmp.eq.s32.totalorder %s20, 1
      %p190 = scmp.ne.s32.totalorder %s185, %s187
      %p191 = scmp.eq.s32.totalorder %s20, 0
      %p192 = por %p190, %p191
      %p193 = scmp.ne.s32.totalorder %s185, %s187
      %p194 = scmp.eq.s32.totalorder %s25, 1
      %p195 = por %p193, %p194
      %p196 = scmp.ne.s32.totalorder %s187, %s188
      %p197 = scmp.eq.s32.totalorder %s25, 0
      %p198 = por %p196, %p197
      %p199 = scmp.ne.s32.totalorder %s187, %s188
      %p200 = scmp.eq.s32.totalorder %s26, 1
      %p201 = por %p199, %p200
      %p203 = scmp.ne.s32.totalorder %s188, %s202
      %p204 = scmp.eq.s32.totalorder %s26, 0
      %p205 = por %p203, %p204
      %s207 = sadd.s32 %s206, 1
      %p210 = scmp.eq.s32.totalorder %s20, 1
      %p211 = scmp.ne.s32.totalorder %s206, %s208
      %p212 = scmp.eq.s32.totalorder %s20, 0
      %p213 = por %p211, %p212
      %p214 = scmp.ne.s32.totalorder %s206, %s208
      %p215 = scmp.eq.s32.totalorder %s25, 1
      %p216 = por %p214, %p215
      %p217 = scmp.ne.s32.totalorder %s208, %s209
      %p218 = scmp.eq.s32.totalorder %s25, 0
      %p219 = por %p217, %p218
      %p220 = scmp.ne.s32.totalorder %s208, %s209
      %p221 = scmp.eq.s32.totalorder %s26, 1
      %p222 = por %p220, %p221
      %p224 = scmp.ne.s32.totalorder %s209, %s223
      %p225 = scmp.eq.s32.totalorder %s26, 0
      %p226 = por %p224, %p225
      %s227 = ssub.s32 %s20, %s27
      %p228 = scmp.eq.s32.totalorder %s227, 0
      %s230 = sadd.s32 %s229, 1
      %s231 = scalar_select %p228, %s229, %s230
      %p234 = pneg %p228
      %p235 = scmp.eq.s32.totalorder %s20, 1
      %p236 = por %p234, %p235
      %p237 = scmp.ne.s32.totalorder %s229, %s232
      %p238 = scmp.eq.s32.totalorder %s20, 0
      %p239 = por %p237, %p238
      %p240 = scmp.ne.s32.totalorder %s229, %s232
      %p241 = scmp.eq.s32.totalorder %s25, 1
      %p242 = por %p240, %p241
      %p243 = scmp.ne.s32.totalorder %s232, %s233
      %p244 = scmp.eq.s32.totalorder %s25, 0
      %p245 = por %p243, %p244
      %p246 = scmp.ne.s32.totalorder %s232, %s233
      %p247 = scmp.eq.s32.totalorder %s26, 1
      %p248 = por %p246, %p247
      %p250 = scmp.ne.s32.totalorder %s233, %s249
      %p251 = scmp.eq.s32.totalorder %s26, 0
      %p252 = por %p250, %p251
      %p253 = scmp.le.s32.totalorder 1, %s20
      %p254 = scmp.lt.s32.totalorder %s20, 3
      %p255 = pnand %p253, %p254
      %p256 = pneg %p255
      // Predicated region
      $region9: #{dcsnn_forward.1} parent=5 // pred_check
        _
      $region10: #{dcsnn_forward.1} parent=5 // pred_check_branch
        %258 = sbr.rel (%p255) target = $region12
      $region11: #{dcsnn_forward.1} parent=5 // pred_region
        %s259 = ssub.s32 %s20, 1
        // Predicated region
        $region13: #{dcsnn_forward.1} parent=11 // pred_check
          %p260 = pneg %p93
        $region14: #{dcsnn_forward.1} parent=11 // pred_check_branch
          %262 = sbr.rel (%p260) target = $region16
        $region15: #{dcsnn_forward.1} parent=11 // pred_region
          _
        $region16: #{dcsnn_forward.1} parent=11 // pred_fallthru
          _
        // Predicated region
        $region17: #{dcsnn_forward.1} parent=11 // pred_check
          %p263 = pneg %p114
        $region18: #{dcsnn_forward.1} parent=11 // pred_check_branch
          %265 = sbr.rel (%p263) target = $region20
        $region19: #{dcsnn_forward.1} parent=11 // pred_region
          _
        $region20: #{dcsnn_forward.1} parent=11 // pred_fallthru
          _
        // Predicated region
        $region21: #{dcsnn_forward.1} parent=11 // pred_check
          %p266 = pneg %p135
        $region22: #{dcsnn_forward.1} parent=11 // pred_check_branch
          %268 = sbr.rel (%p266) target = $region24
        $region23: #{dcsnn_forward.1} parent=11 // pred_region
          _
        $region24: #{dcsnn_forward.1} parent=11 // pred_fallthru
          _
        // Predicated region
        $region25: #{dcsnn_forward.1} parent=11 // pred_check
          %p269 = pneg %p156
        $region26: #{dcsnn_forward.1} parent=11 // pred_check_branch
          %271 = sbr.rel (%p269) target = $region28
        $region27: #{dcsnn_forward.1} parent=11 // pred_region
          _
        $region28: #{dcsnn_forward.1} parent=11 // pred_fallthru
          _
        // Predicated region
        $region29: #{dcsnn_forward.1} parent=11 // pred_check
          %p272 = pneg %p177
        $region30: #{dcsnn_forward.1} parent=11 // pred_check_branch
          %274 = sbr.rel (%p272) target = $region32
        $region31: #{dcsnn_forward.1} parent=11 // pred_region
          _
        $region32: #{dcsnn_forward.1} parent=11 // pred_fallthru
          _
        // Predicated region
        $region33: #{dcsnn_forward.1} parent=11 // pred_check
          %p275 = pneg %p198
        $region34: #{dcsnn_forward.1} parent=11 // pred_check_branch
          %277 = sbr.rel (%p275) target = $region36
        $region35: #{dcsnn_forward.1} parent=11 // pred_region
          _
        $region36: #{dcsnn_forward.1} parent=11 // pred_fallthru
          _
        // Predicated region
        $region37: #{dcsnn_forward.1} parent=11 // pred_check
          %p278 = pneg %p219
        $region38: #{dcsnn_forward.1} parent=11 // pred_check_branch
          %280 = sbr.rel (%p278) target = $region40
        $region39: #{dcsnn_forward.1} parent=11 // pred_region
          _
        $region40: #{dcsnn_forward.1} parent=11 // pred_fallthru
          _
      $region12: #{dcsnn_forward.1} parent=5 // pred_fallthru
        _
      %p281 = scmp.lt.s32.totalorder %s20, 2
      // Predicated region
      $region41: #{dcsnn_forward.1} parent=5 // pred_check
        %p282 = pneg %p281
      $region42: #{dcsnn_forward.1} parent=5 // pred_check_branch
        %284 = sbr.rel (%p282) target = $region44
      $region43: #{dcsnn_forward.1} parent=5 // pred_region
        // Predicated region
        $region45: #{dcsnn_forward.1} parent=43 // pred_check
          %p285 = pneg %p40
        $region46: #{dcsnn_forward.1} parent=43 // pred_check_branch
          %287 = sbr.rel (%p285) target = $region48
        $region47: #{dcsnn_forward.1} parent=43 // pred_region
          %p288 = scmp.lt.s32.totalorder %s20, 1
          %s289 = scalar_select %p288, %s20, 1
          %s290 = smul.addr %s289, 2
          %s291 = scalar_lea.vmem %s0, %s290
        $region48: #{dcsnn_forward.1} parent=43 // pred_fallthru
          _
        // Predicated region
        $region49: #{dcsnn_forward.1} parent=43 // pred_check
          %p292 = pneg %p66
        $region50: #{dcsnn_forward.1} parent=43 // pred_check_branch
          %294 = sbr.rel (%p292) target = $region52
        $region51: #{dcsnn_forward.1} parent=43 // pred_region
          %p295 = scmp.lt.s32.totalorder %s20, 1
          %s296 = scalar_select %p295, %s20, 1
          %s297 = smul.addr %s296, 2
          %s298 = scalar_lea.vmem %s1, %s297
        $region52: #{dcsnn_forward.1} parent=43 // pred_fallthru
          _
      $region44: #{dcsnn_forward.1} parent=5 // pred_fallthru
        _
      %p299 = scmp.le.s32.totalorder 1, %s20
      %p300 = scmp.lt.s32.totalorder %s20, 3
      %p301 = pnand %p299, %p300
      %p302 = pneg %p301
      // Predicated region
      $region53: #{dcsnn_forward.1} parent=5 // pred_check
        _
      $region54: #{dcsnn_forward.1} parent=5 // pred_check_branch
        %304 = sbr.rel (%p301) target = $region56
      $region55: #{dcsnn_forward.1} parent=5 // pred_region
        %s305 = ssub.s32 %s20, 1
        %p306 = scmp.lt.s32.totalorder %s25, 1
        %s307 = scalar_select %p306, %s25, 1
        %s308 = smul.addr %s307, 2
        %s309 = scalar_lea.vmem %s0, %s308
        %p310 = pneg %p46
        %p311 = pneg %p43
        %p312 = scmp.lt.s32.totalorder %s25, 1
        %s313 = scalar_select %p312, %s25, 1
        %s314 = smul.addr %s313, 2
        %s315 = scalar_lea.vmem %s1, %s314
        %p316 = pneg %p72
        %p317 = pneg %p69
        %p318 = pneg %p93
        %p319 = pneg %p90
        %p320 = pneg %p114
        %p321 = pneg %p111
        %p322 = pneg %p135
        %p323 = pneg %p132
        %p324 = pneg %p156
        %p325 = pneg %p153
        %p326 = pneg %p177
        %p327 = pneg %p174
        %p328 = pneg %p198
        %p329 = pneg %p195
        %p330 = pneg %p219
        %p331 = pneg %p216
        %p332 = pneg %p245
        %p333 = pneg %p242
        %s334 = sand.u32 %s232, 1
        %s335 = scalar_lea.sflag [#allocation4], %s334
        %s336 = sand.u32 %s232, 1
        %s337 = scalar_lea.vmem [#allocation3], %s336
        %p338 = scmp.lt.s32.totalorder %s25, 1
        %s339 = scalar_select %p338, %s25, 1
        %s340 = smul.addr %s339, 2
        %s341 = scalar_lea.vmem %s0, %s340
        %p342 = scmp.lt.s32.totalorder %s25, 1
        %s343 = scalar_select %p342, %s25, 1
        %s344 = smul.addr %s343, 2
        %s345 = scalar_lea.vmem %s1, %s344
        %v346 = vld [vmem:[%s341] sm:$0x3]
        %v347 = vld [vmem:[%s345] sm:$0x3]
        %v348 = vld [vmem:[%s2] sm:$0xff]
        %v349 = vld [vmem:[%s2 + $0x8] sm:$0xff]
        %v350 = vld [vmem:[%s2 + $0x10] sm:$0xff]
        %v351 = vld [vmem:[%s2 + $0x18] sm:$0xff]
        %v352 = vld [vmem:[%s3] sm:$0xff]
        %v353 = vld [vmem:[%s3 + $0x8] sm:$0xff]
        %v354 = vld [vmem:[%s3 + $0x10] sm:$0xff]
        %v355 = vld [vmem:[%s3 + $0x18] sm:$0xff]
        %357 = vset.pattern.permute.xlu0 0
        %358 = vperm.xlu0 %357, %v348
        %v359 = vpop.permute.xlu0 %358
        %362 = vset.pattern.permute.xlu0 0
        %363 = vperm.xlu0 %362, %v349
        %v364 = vpop.permute.xlu0 %363
        %367 = vset.pattern.permute.xlu0 0
        %368 = vperm.xlu0 %367, %v350
        %v369 = vpop.permute.xlu0 %368
        %372 = vset.pattern.permute.xlu0 0
        %373 = vperm.xlu0 %372, %v351
        %v374 = vpop.permute.xlu0 %373
        %v376 = vlaneseq
        %v377 = vshrl.u32 %v376, 7
        %v378 = vsub.s32 0, %v377
        %v379 = vrot.slane %v346, %v378
        %v380 = vmul.f32 %v359, %v379
        %v381 = vmul.f32 %v364, %v379
        %v382 = vmul.f32 %v369, %v379
        %v383 = vmul.f32 %v374, %v379
        %384 = vset.pattern.permute.xlu0 1
        %385 = vperm.xlu0 %384, %v348
        %v386 = vpop.permute.xlu0 %385
        %388 = vset.pattern.permute.xlu0 1
        %389 = vperm.xlu0 %388, %v349
        %v390 = vpop.permute.xlu0 %389
        %392 = vset.pattern.permute.xlu0 1
        %393 = vperm.xlu0 %392, %v350
        %v394 = vpop.permute.xlu0 %393
        %396 = vset.pattern.permute.xlu0 1
        %397 = vperm.xlu0 %396, %v351
        %v398 = vpop.permute.xlu0 %397
        %v400 = vlaneseq
        %v401 = vshrl.u32 %v400, 7
        %v402 = vsub.s32 1, %v401
        %v403 = vrot.slane %v346, %v402
        %v404 = vmul.f32 %v386, %v403
        %v405 = vmul.f32 %v390, %v403
        %v406 = vmul.f32 %v394, %v403
        %v407 = vmul.f32 %v398, %v403
        %v408 = vadd.f32 %v380, %v404
        %v409 = vadd.f32 %v381, %v405
        %v410 = vadd.f32 %v382, %v406
        %v411 = vadd.f32 %v383, %v407
        %413 = vset.pattern.permute.xlu0 0
        %414 = vperm.xlu0 %413, %v352
        %v415 = vpop.permute.xlu0 %414
        %418 = vset.pattern.permute.xlu0 0
        %419 = vperm.xlu0 %418, %v353
        %v420 = vpop.permute.xlu0 %419
        %423 = vset.pattern.permute.xlu0 0
        %424 = vperm.xlu0 %423, %v354
        %v425 = vpop.permute.xlu0 %424
        %428 = vset.pattern.permute.xlu0 0
        %429 = vperm.xlu0 %428, %v355
        %v430 = vpop.permute.xlu0 %429
        %v432 = vlaneseq
        %v433 = vshrl.u32 %v432, 7
        %v434 = vsub.s32 0, %v433
        %v435 = vrot.slane %v347, %v434
        %v436 = vmul.f32 %v415, %v435
        %v437 = vmul.f32 %v420, %v435
        %v438 = vmul.f32 %v425, %v435
        %v439 = vmul.f32 %v430, %v435
        %v440 = vadd.f32 %v408, %v436
        %v441 = vadd.f32 %v409, %v437
        %v442 = vadd.f32 %v410, %v438
        %v443 = vadd.f32 %v411, %v439
        %444 = vset.pattern.permute.xlu0 1
        %445 = vperm.xlu0 %444, %v352
        %v446 = vpop.permute.xlu0 %445
        %448 = vset.pattern.permute.xlu0 1
        %449 = vperm.xlu0 %448, %v353
        %v450 = vpop.permute.xlu0 %449
        %452 = vset.pattern.permute.xlu0 1
        %453 = vperm.xlu0 %452, %v354
        %v454 = vpop.permute.xlu0 %453
        %456 = vset.pattern.permute.xlu0 1
        %457 = vperm.xlu0 %456, %v355
        %v458 = vpop.permute.xlu0 %457
        %v460 = vlaneseq
        %v461 = vshrl.u32 %v460, 7
        %v462 = vsub.s32 1, %v461
        %v463 = vrot.slane %v347, %v462
        %v464 = vmul.f32 %v446, %v463
        %v465 = vmul.f32 %v450, %v463
        %v466 = vmul.f32 %v454, %v463
        %v467 = vmul.f32 %v458, %v463
        %v468 = vadd.f32 %v440, %v464
        %v469 = vadd.f32 %v441, %v465
        %v470 = vadd.f32 %v442, %v466
        %v471 = vadd.f32 %v443, %v467
        %v472 = vld [vmem:[%s4] sm:$0xff]
        %v473 = vld [vmem:[%s4 + $0x8] sm:$0xff]
        %v474 = vld [vmem:[%s4 + $0x10] sm:$0xff]
        %v475 = vld [vmem:[%s4 + $0x18] sm:$0xff]
        %477 = vset.pattern.permute.xlu0 0
        %478 = vperm.xlu0 %477, %v472
        %v479 = vpop.permute.xlu0 %478
        %482 = vset.pattern.permute.xlu0 0
        %483 = vperm.xlu0 %482, %v473
        %v484 = vpop.permute.xlu0 %483
        %487 = vset.pattern.permute.xlu0 0
        %488 = vperm.xlu0 %487, %v474
        %v489 = vpop.permute.xlu0 %488
        %492 = vset.pattern.permute.xlu0 0
        %493 = vperm.xlu0 %492, %v475
        %v494 = vpop.permute.xlu0 %493
        %v496 = vadd.f32 %v468, %v479
        %v497 = vadd.f32 %v469, %v484
        %v498 = vadd.f32 %v470, %v489
        %v499 = vadd.f32 %v471, %v494
        %v500 = vmul.f32 %v496, 0.5
        %v501 = vmul.f32 %v497, 0.5
        %v502 = vmul.f32 %v498, 0.5
        %v503 = vmul.f32 %v499, 0.5
        %v504 = vtanh.pop %v500
        %v505 = vtanh.pop %v501
        %v506 = vtanh.pop %v502
        %v507 = vtanh.pop %v503
        %v508 = vmul.f32 %v504, 0.5
        %v509 = vmul.f32 %v505, 0.5
        %v510 = vmul.f32 %v506, 0.5
        %v511 = vmul.f32 %v507, 0.5
        %v512 = vadd.f32 %v508, 0.5
        %v513 = vadd.f32 %v509, 0.5
        %v514 = vadd.f32 %v510, 0.5
        %v515 = vadd.f32 %v511, 0.5
        %v516 = vld [vmem:[%s5] sm:$0xff]
        %v517 = vld [vmem:[%s5 + $0x8] sm:$0xff]
        %v518 = vld [vmem:[%s5 + $0x10] sm:$0xff]
        %v519 = vld [vmem:[%s5 + $0x18] sm:$0xff]
        %v520 = vld [vmem:[%s6] sm:$0xff]
        %v521 = vld [vmem:[%s6 + $0x8] sm:$0xff]
        %v522 = vld [vmem:[%s6 + $0x10] sm:$0xff]
        %v523 = vld [vmem:[%s6 + $0x18] sm:$0xff]
        %525 = vset.pattern.permute.xlu0 0
        %526 = vperm.xlu0 %525, %v520
        %v527 = vpop.permute.xlu0 %526
        %530 = vset.pattern.permute.xlu0 0
        %531 = vperm.xlu0 %530, %v521
        %v532 = vpop.permute.xlu0 %531
        %535 = vset.pattern.permute.xlu0 0
        %536 = vperm.xlu0 %535, %v522
        %v537 = vpop.permute.xlu0 %536
        %540 = vset.pattern.permute.xlu0 0
        %541 = vperm.xlu0 %540, %v523
        %v542 = vpop.permute.xlu0 %541
        %vm544 = vcmask 261120
        %v546 = vsel %vm544, %v516, 0
        %v549 = vsel %vm544, %v517, 0
        %v552 = vsel %vm544, %v518, 0
        %v555 = vsel %vm544, %v519, 0
        %557 = vmatprep.subr.mxu0 0.0
        %558 = vmatpush1.msra.mxu0 0.0
        %559 = vmatprep.subr.mxu0 0.0
        %560 = vmatpush1.msra.mxu0 0.0
        %561 = vmatprep.subr.mxu0 0.0
        %562 = vmatpush1.msra.mxu0 0.0
        %563 = vmatprep.subr.mxu0 0.0
        %564 = vmatpush1.msra.mxu0 0.0
        %565 = vmatprep.subr.mxu0 0.0
        %566 = vmatpush1.msra.mxu0 0.0
        %567 = vmatprep.subr.mxu0 0.0
        %568 = vmatpush1.msra.mxu0 0.0
        %569 = vmatprep.subr.mxu0 0.0
        %570 = vmatpush1.msra.mxu0 0.0
        %571 = vmatprep.subr.mxu0 0.0
        %572 = vmatpush1.msra.mxu0 0.0
        %573 = vmatprep.subr.mxu0 0.0
        %574 = vmatpush1.msra.mxu0 0.0
        %575 = vmatprep.subr.mxu0 0.0
        %576 = vmatpush1.msra.mxu0 0.0
        %577 = vmatprep.subr.mxu0 0.0
        %578 = vmatpush1.msra.mxu0 0.0
        %579 = vmatprep.subr.mxu0 0.0
        %580 = vmatpush1.msra.mxu0 0.0
        %581 = vmatprep.subr.mxu0 0.0
        %582 = vmatpush1.msra.mxu0 %v515
        %583 = vmatprep.subr.mxu0 0.0
        %584 = vmatpush1.msra.mxu0 %v514
        %585 = vmatprep.subr.mxu0 0.0
        %586 = vmatpush1.msra.mxu0 %v513
        %587 = vmatprep.subr.mxu0 0.0
        %588 = vmatpush1.msra.mxu0 %v512
        %589 = vmatprep.subr.mxu0 0.0
        %590 = vmatpush2.msra.mxu0 0.0
        %591 = vmatprep.subr.mxu0 0.0
        %592 = vmatpush2.msra.mxu0 0.0
        %593 = vmatprep.subr.mxu0 0.0
        %594 = vmatpush2.msra.mxu0 0.0
        %595 = vmatprep.subr.mxu0 0.0
        %596 = vmatpush2.msra.mxu0 0.0
        %597 = vmatprep.subr.mxu0 0.0
        %598 = vmatpush2.msra.mxu0 0.0
        %599 = vmatprep.subr.mxu0 0.0
        %600 = vmatpush2.msra.mxu0 0.0
        %601 = vmatprep.subr.mxu0 0.0
        %602 = vmatpush2.msra.mxu0 0.0
        %603 = vmatprep.subr.mxu0 0.0
        %604 = vmatpush2.msra.mxu0 0.0
        %605 = vmatprep.subr.mxu0 0.0
        %606 = vmatpush2.msra.mxu0 0.0
        %607 = vmatprep.subr.mxu0 0.0
        %608 = vmatpush2.msra.mxu0 0.0
        %609 = vmatprep.subr.mxu0 0.0
        %610 = vmatpush2.msra.mxu0 0.0
        %611 = vmatprep.subr.mxu0 0.0
        %612 = vmatpush2.msra.mxu0 0.0
        %613 = vmatprep.subr.mxu0 0.0
        %614 = vmatpush2.msra.mxu0 0.0
        %615 = vmatprep.subr.mxu0 0.0
        %616 = vmatpush2.msra.mxu0 0.0
        %617 = vmatprep.subr.mxu0 0.0
        %618 = vmatpush2.msra.mxu0 0.0
        %619 = vmatprep.subr.mxu0 0.0
        %620 = vmatpush2.msra.mxu0 0.0
        %621 = vmatprep.mubr.f32.mxu0 0.0
        %622 = vmatmul.mubr.f32.gmra.mxu0 %v546
        %v623 = vpop.f32.mrf.mxu0
        %v624 = vadd.f32 %v527, %v623
        %v625 = vpop.f32.mrf.mxu0
        %626 = vmatprep.mubr.f32.mxu0 0.0
        %627 = vmatmul.mubr.f32.gmra.mxu0 %v549
        %v628 = vpop.f32.mrf.mxu0
        %v629 = vadd.f32 %v532, %v628
        %v630 = vpop.f32.mrf.mxu0
        %631 = vmatprep.mubr.f32.mxu0 0.0
        %632 = vmatmul.mubr.f32.gmra.mxu0 %v552
        %v633 = vpop.f32.mrf.mxu0
        %v634 = vadd.f32 %v537, %v633
        %v635 = vpop.f32.mrf.mxu0
        %636 = vmatprep.mubr.f32.mxu0 0.0
        %637 = vmatmul.mubr.f32.gmra.mxu0 %v555
        %v638 = vpop.f32.mrf.mxu0
        %v639 = vadd.f32 %v542, %v638
        %v640 = vpop.f32.mrf.mxu0
        %641 = vdwg.mxu0
        %v642 = vmul.f32 %v624, 0.5
        %v643 = vmul.f32 %v629, 0.5
        %v644 = vmul.f32 %v634, 0.5
        %v645 = vmul.f32 %v639, 0.5
        %v646 = vtanh.pop %v642
        %v647 = vtanh.pop %v643
        %v648 = vtanh.pop %v644
        %v649 = vtanh.pop %v645
        %v650 = vmul.f32 %v646, 0.5
        %v651 = vmul.f32 %v647, 0.5
        %v652 = vmul.f32 %v648, 0.5
        %v653 = vmul.f32 %v649, 0.5
        %v654 = vadd.f32 %v650, 0.5
        %v655 = vadd.f32 %v651, 0.5
        %v656 = vadd.f32 %v652, 0.5
        %v657 = vadd.f32 %v653, 0.5
        %v658 = vld [vmem:[%s7] sm:$0xff]
        %v659 = vld [vmem:[%s7 + $0x8] sm:$0xff]
        %v660 = vld [vmem:[%s7 + $0x10] sm:$0xff]
        %v661 = vld [vmem:[%s7 + $0x18] sm:$0xff]
        %663 = vset.pattern.permute.xlu0 0
        %664 = vperm.xlu0 %663, %v658
        %v665 = vpop.permute.xlu0 %664
        %668 = vset.pattern.permute.xlu0 0
        %669 = vperm.xlu0 %668, %v659
        %v670 = vpop.permute.xlu0 %669
        %673 = vset.pattern.permute.xlu0 0
        %674 = vperm.xlu0 %673, %v660
        %v675 = vpop.permute.xlu0 %674
        %678 = vset.pattern.permute.xlu0 0
        %679 = vperm.xlu0 %678, %v661
        %v680 = vpop.permute.xlu0 %679
        %v682 = vmul.f32 %v665, %v654
        %v683 = vmul.f32 %v670, %v655
        %v684 = vmul.f32 %v675, %v656
        %v685 = vmul.f32 %v680, %v657
        %v686 = vadd.f32 %v682, %v683
        %v687 = vadd.f32 %v686, %v684
        %v688 = vadd.f32 %v687, %v685
        %v689 = vrot.slane %v688, 4
        %v690 = vadd.f32 %v688, %v689
        %v691 = vrot.slane %v690, 2
        %v692 = vadd.f32 %v690, %v691
        %v693 = vrot.slane %v692, 1
        %v694 = vadd.f32 %v692, %v693
        %v695 = vld [vmem:[#allocation2] sm:$0x1]
        %697 = vset.pattern.permute.xlu0 0
        %698 = vperm.xlu0 %697, %v695
        %v699 = vpop.permute.xlu0 %698
        %v701 = vlaneseq
        %v702 = vshrl.u32 %v701, 7
        %v703 = vsub.s32 0, %v702
        %v704 = vrot.slane %v699, %v703
        %v705 = vadd.f32 %v694, %v704
        %706 = vst [vmem:[%s337] sm:$0x1] %v705
        %s707 = sand.u32 %s232, 1
        %s708 = scalar_lea.sflag [#allocation4], %s707
        %s709 = sand.u32 %s232, 1
        %s710 = scalar_lea.vmem [#allocation3], %s709
        // Predicated region
        $region57: #{dcsnn_forward.1} parent=55 // pred_check
          %p711 = pneg %p242
        $region58: #{dcsnn_forward.1} parent=55 // pred_check_branch
          %713 = sbr.rel (%p711) target = $region60
        $region59: #{dcsnn_forward.1} parent=55 // pred_region
          %s715 = ssub.s32 16, 16
          %716 = vsyncadd %s708, %s715
          %s717 = smul.addr %s25, 16
          %s718 = scalar_lea.hbm %s9, %s717
          %s720 = sshll.u32 %s710, 4
          %s721 = int_to_ptr.vmem [resolvable:$true] %s720
          %723 = dma.vmem_to_hbm [thread:$0]  %s721, 16, %s718, %s708
        $region60: #{dcsnn_forward.1} parent=55 // pred_fallthru
          _
      $region56: #{dcsnn_forward.1} parent=5 // pred_fallthru
        _
      %p724 = scmp.le.s32.totalorder 2, %s20
      // Predicated region
      $region61: #{dcsnn_forward.1} parent=5 // pred_check
        %p725 = pneg %p724
      $region62: #{dcsnn_forward.1} parent=5 // pred_check_branch
        %727 = sbr.rel (%p725) target = $region64
      $region63: #{dcsnn_forward.1} parent=5 // pred_region
        %s728 = ssub.s32 %s20, 2
        // Predicated region
        $region65: #{dcsnn_forward.1} parent=63 // pred_check
          %p729 = pneg %p248
        $region66: #{dcsnn_forward.1} parent=63 // pred_check_branch
          %731 = sbr.rel (%p729) target = $region68
        $region67: #{dcsnn_forward.1} parent=63 // pred_region
          %s732 = sand.u32 %s233, 1
          %s733 = scalar_lea.sflag [#allocation4], %s732
          %s734 = sand.u32 %s233, 1
          %s735 = scalar_lea.vmem [#allocation3], %s734
          %736 = dma.done %s733, 16
        $region68: #{dcsnn_forward.1} parent=63 // pred_fallthru
          _
      $region64: #{dcsnn_forward.1} parent=5 // pred_fallthru
        _
    $region6: #{dcsnn_forward.1} parent=1 // loop_footer
      %s24 = sadd.s32 1, %s20
    $region7: #{dcsnn_forward.1} parent=1 // loop_footer_branch
      %19 = sbr.rel target = $region3
    $region8: #{dcsnn_forward.1} parent=1 // loop_exit
      _
    %737 = vsyncpa [#allocation4], 1
    %s738 = scalar_lea.sflag [#allocation4], 1
    %739 = vsyncpa %s738, 1

</llo_original>
